<compile_context>
chip_gen: v7x
topology: tpu7x:2x2x1
jax: 0.10.0
libtpu: 0.0.40
codegen_flags: <defaults>
</compile_context>

<pallas_src>
import functools
import math

import jax
import jax.numpy as jnp
from jax.experimental import pallas as pl
from jax.experimental.pallas import tpu as pltpu


# ----------------------------------------------------------------------------
# helpers (generation-aware sizing)
# ----------------------------------------------------------------------------
def _vmem_capacity():
    try:
        return int(pltpu.get_tpu_info().vmem_capacity_bytes)
    except Exception:
        return 64 * 1024 * 1024          # conservative (v7x per-TC)


def _default_row_tile():
    # v5e/v6e: 128 MiB VMEM/TC -> bigger row tiles; v7x: 64 MiB -> stay <= 256.
    return 512 if _vmem_capacity() >= 96 * 1024 * 1024 else 256


def _pick_tile(n, max_t):
    """Largest tile <= max_t (multiple of 8) that divides n; n itself if small."""
    if n <= max_t:
        return n
    for t in range(max_t - (max_t % 8), 7, -8):
        if n % t == 0:
            return t
    # TODO(synk): pathological n with no multiple-of-8 divisor -> whole extent.
    return n


def _red_tile(k, max_tk):
    # Largest 128-multiple <= max_tk that divides k; else keep k resident.
    if k <= max_tk:
        return k
    for cand in range(max_tk - (max_tk % 128), 127, -128):
        if k % cand == 0:
            return cand
    return k


def _vmem_limit(buffer_bytes, scratch_bytes=0):
    cap = _vmem_capacity()
    want = int((2 * buffer_bytes + scratch_bytes) * 1.25)   # dbl-buffer + headroom
    want = max(want, 32 * 1024 * 1024)
    return min(want, int(cap * 0.9))


# ----------------------------------------------------------------------------
# Kernel A: LayerNorm (torch unbiased std) fused with the QKV projection
# ----------------------------------------------------------------------------
def _ln_matmul_kernel(x_ref, a_ref, bln_ref, w_ref, b_ref, o_ref, *,
                      eps, n_feat, compute_dtype):
    x = x_ref[...].astype(jnp.float32)
    mean = jnp.mean(x, axis=-1, keepdims=True)
    diff = x - mean
    var = jnp.sum(diff * diff, axis=-1, keepdims=True) / (n_feat - 1)
    inv = pl.reciprocal(jnp.sqrt(var) + eps, approx=False)       # per-row column
    x2 = (a_ref[...] * diff * inv + bln_ref[...]).astype(compute_dtype)
    y = jnp.dot(x2, w_ref[...], preferred_element_type=jnp.float32)
    o_ref[...] = (y + b_ref[...]).astype(o_ref.dtype)


def ln_qkv_pallas(x2d, alpha, beta, w, b, *, out_dtype, tm, eps=1e-6):
    m, d = x2d.shape
    n = w.shape[1]
    out_isz = jnp.dtype(out_dtype).itemsize
    # TODO(synk): for very large d_model the resident (d, 3d) weight would need
    # a K-reduction grid axis; fine for typical encoder widths.
    tile_bytes = (tm * d * 4 + 2 * d * 4 + d * n * w.dtype.itemsize
                  + n * 4 + tm * n * out_isz)
    cost = pl.CostEstimate(
        flops=int(2 * m * d * n), transcendentals=0,
        bytes_accessed=int(x2d.size * 4 + w.size * w.dtype.itemsize
                           + b.size * 4 + 2 * d * 4 + m * n * out_isz))
    return pl.pallas_call(
        functools.partial(_ln_matmul_kernel, eps=eps, n_feat=d,
                          compute_dtype=w.dtype),
        out_shape=jax.ShapeDtypeStruct((m, n), out_dtype),
        grid_spec=pltpu.PrefetchScalarGridSpec(
            num_scalar_prefetch=0,
            grid=(m // tm,),
            in_specs=[
                pl.BlockSpec((tm, d), lambda i: (i, 0)),
                pl.BlockSpec((1, d), lambda i: (0, 0)),
                pl.BlockSpec((1, d), lambda i: (0, 0)),
                pl.BlockSpec((d, n), lambda i: (0, 0)),
                pl.BlockSpec((1, n), lambda i: (0, 0)),
            ],
            out_specs=pl.BlockSpec((tm, n), lambda i: (i, 0)),
        ),
        compiler_params=pltpu.CompilerParams(
            dimension_semantics=("parallel",),
            vmem_limit_bytes=_vmem_limit(tile_bytes)),
        cost_estimate=cost,
    )(x2d, alpha, beta, w, b)


# ----------------------------------------------------------------------------
# Kernel B: attention core softmax(q@k^T/sqrt(dk), mask-fill 1e-9) @ v
#   grid = (batch, q_tiles), both parallel; batched einsum over heads;
#   lane-dense (tq, d_model) output with heads concatenated on features.
# ----------------------------------------------------------------------------
def _attn_kernel(q_ref, k_ref, v_ref, m_ref, o_ref, *, scale, heads):
    q = q_ref[0]              # (H, tq, dk)
    k = k_ref[0]              # (H, S, dk)
    v = v_ref[0]              # (H, S, dk)
    mask = m_ref[0]           # (1, S) key-padding row
    s = jnp.einsum("hqd,hkd->hqk", q, k,
                   preferred_element_type=jnp.float32) * scale          # (H,tq,S)
    fill = jnp.broadcast_to((mask == 0.0)[None, :, :], s.shape)
    s = jnp.where(fill, jnp.float32(1e-9), s)      # torch masked_fill(mask==0, 1e-9)
    s = s - jnp.max(s, axis=-1, keepdims=True)
    p = jnp.exp(s)
    p = p * pl.reciprocal(jnp.sum(p, axis=-1, keepdims=True), approx=True)
    o = jnp.einsum("hqk,hkd->hqd", p.astype(v.dtype), v,
                   preferred_element_type=jnp.float32)                  # (H,tq,dk)
    # heads concatenated on features == torch .transpose(1,2).view(bs,-1,d_model)
    o_ref[0] = jnp.concatenate([o[h] for h in range(heads)],
                               axis=-1).astype(o_ref.dtype)


def attention_pallas(q, k, v, mask_b1s, *, d_k, out_dtype, max_tq=256):
    bsz, heads, seq, dk = q.shape
    d_model = heads * dk
    tq = _pick_tile(seq, max_tq)            # caps VMEM on v7x, adds a parallel axis
    out_isz = jnp.dtype(out_dtype).itemsize
    tile_bytes = (heads * tq * dk * q.dtype.itemsize
                  + 2 * heads * seq * dk * q.dtype.itemsize
                  + seq * 4 + tq * d_model * out_isz)
    score_bytes = heads * tq * seq * 4
    # TODO(synk): very long sequences would want a flash-style online softmax
    # over K/V tiles instead of full-S K/V blocks.
    cost = pl.CostEstimate(
        flops=int(4 * bsz * heads * seq * seq * dk),
        transcendentals=int(bsz * heads * seq * seq),
        bytes_accessed=int(3 * q.size * q.dtype.itemsize + mask_b1s.size * 4
                           + bsz * seq * d_model * out_isz))
    return pl.pallas_call(
        functools.partial(_attn_kernel, scale=1.0 / math.sqrt(d_k), heads=heads),
        out_shape=jax.ShapeDtypeStruct((bsz, seq, d_model), out_dtype),
        grid_spec=pltpu.PrefetchScalarGridSpec(
            num_scalar_prefetch=0,
            grid=(bsz, seq // tq),
            in_specs=[
                pl.BlockSpec((1, heads, tq, dk), lambda b, qi: (b, 0, qi, 0)),
                pl.BlockSpec((1, heads, seq, dk), lambda b, qi: (b, 0, 0, 0)),
                pl.BlockSpec((1, heads, seq, dk), lambda b, qi: (b, 0, 0, 0)),
                pl.BlockSpec((1, 1, seq), lambda b, qi: (b, 0, 0)),
            ],
            out_specs=pl.BlockSpec((1, tq, d_model), lambda b, qi: (b, qi, 0)),
        ),
        compiler_params=pltpu.CompilerParams(
            dimension_semantics=("parallel", "parallel"),
            vmem_limit_bytes=_vmem_limit(tile_bytes, scratch_bytes=score_bytes)),
        cost_estimate=cost,
    )(q, k, v, mask_b1s)


# ----------------------------------------------------------------------------
# Kernel C: attention output projection fused with the residual add
# ----------------------------------------------------------------------------
def _outproj_residual_kernel(ctx_ref, w_ref, b_ref, res_ref, o_ref):
    y = jnp.dot(ctx_ref[...], w_ref[...], preferred_element_type=jnp.float32)
    o_ref[...] = (y + b_ref[...] + res_ref[...].astype(jnp.float32)).astype(o_ref.dtype)


def outproj_residual_pallas(ctx2d, w, b, resid, *, tm):
    m, d = ctx2d.shape
    tile_bytes = (tm * d * ctx2d.dtype.itemsize + d * d * w.dtype.itemsize
                  + d * 4 + 2 * tm * d * 4)
    cost = pl.CostEstimate(
        flops=int(2 * m * d * d), transcendentals=0,
        bytes_accessed=int(ctx2d.size * ctx2d.dtype.itemsize
                           + w.size * w.dtype.itemsize + d * 4 + 2 * m * d * 4))
    return pl.pallas_call(
        _outproj_residual_kernel,
        out_shape=jax.ShapeDtypeStruct((m, d), resid.dtype),
        grid_spec=pltpu.PrefetchScalarGridSpec(
            num_scalar_prefetch=0,
            grid=(m // tm,),
            in_specs=[
                pl.BlockSpec((tm, d), lambda i: (i, 0)),
                pl.BlockSpec((d, d), lambda i: (0, 0)),
                pl.BlockSpec((1, d), lambda i: (0, 0)),
                pl.BlockSpec((tm, d), lambda i: (i, 0)),
            ],
            out_specs=pl.BlockSpec((tm, d), lambda i: (i, 0)),
        ),
        compiler_params=pltpu.CompilerParams(
            dimension_semantics=("parallel",),
            vmem_limit_bytes=_vmem_limit(tile_bytes)),
        cost_estimate=cost,
    )(ctx2d, w, b, resid)


# ----------------------------------------------------------------------------
# Kernel D: LayerNorm + FeedForward (relu(x2@W1+b1)@W2+b2) + residual add.
#   d_ff is either resident (one k step) or streamed as a reduction axis.
# ----------------------------------------------------------------------------
def _ln_ffn_residual_kernel(x_ref, a_ref, bln_ref, w1_ref, b1_ref, w2_ref, b2_ref,
                            o_ref, x2_ref, acc_ref, *, eps, n_feat, compute_dtype):
    kstep = pl.program_id(1)

    @pl.when(kstep == 0)
    def _():
        x = x_ref[...].astype(jnp.float32)
        mean = jnp.mean(x, axis=-1, keepdims=True)
        diff = x - mean
        var = jnp.sum(diff * diff, axis=-1, keepdims=True) / (n_feat - 1)
        inv = pl.reciprocal(jnp.sqrt(var) + eps, approx=False)
        x2_ref[...] = (a_ref[...] * diff * inv + bln_ref[...]).astype(compute_dtype)
        acc_ref[...] = jnp.zeros_like(acc_ref)

    h = jnp.dot(x2_ref[...], w1_ref[...], preferred_element_type=jnp.float32)
    h = jnp.maximum(h + b1_ref[...], 0.0)          # bias + ReLU in f32
    # TODO(synk): training-mode dropout would use pltpu.prng_random_bits here.
    acc_ref[...] += jnp.dot(h.astype(compute_dtype), w2_ref[...],
                            preferred_element_type=jnp.float32)

    @pl.when(kstep == pl.num_programs(1) - 1)
    def _():
        o_ref[...] = (acc_ref[...] + b2_ref[...]
                      + x_ref[...].astype(jnp.float32)).astype(o_ref.dtype)


def ln_ffn_residual_pallas(x2d, alpha, beta, w1, b1, w2, b2, *, tm, eps=1e-6):
    m, d = x2d.shape
    dff = w1.shape[1]
    w_isz = jnp.dtype(w1.dtype).itemsize
    cap = _vmem_capacity()
    # Keep W1/W2 resident if (double-buffered) weights use <25% of VMEM,
    # otherwise stream 512-wide d_ff slabs with an f32 accumulator.
    tff = dff if 2 * (2 * d * dff * w_isz) <= cap // 4 else _red_tile(dff, 512)
    n_row_tiles = m // tm
    tile_bytes = (tm * d * 4 + 2 * d * 4
                  + d * tff * w_isz + tff * 4
                  + tff * d * w_isz + d * 4
                  + tm * d * 4)
    scratch_bytes = tm * d * (w_isz + 4) + tm * tff * 4
    weight_passes = 1 if tff == dff else n_row_tiles
    cost = pl.CostEstimate(
        flops=int(4 * m * d * dff), transcendentals=0,
        bytes_accessed=int(x2d.size * 4
                           + weight_passes * (w1.size + w2.size) * w_isz
                           + (b1.size + b2.size + 2 * d) * 4 + m * d * 4))
    return pl.pallas_call(
        functools.partial(_ln_ffn_residual_kernel, eps=eps, n_feat=d,
                          compute_dtype=w1.dtype),
        out_shape=jax.ShapeDtypeStruct((m, d), x2d.dtype),
        grid_spec=pltpu.PrefetchScalarGridSpec(
            num_scalar_prefetch=0,
            grid=(n_row_tiles, dff // tff),
            in_specs=[
                pl.BlockSpec((tm, d), lambda i, k: (i, 0)),     # x (LN + residual)
                pl.BlockSpec((1, d), lambda i, k: (0, 0)),      # ln alpha
                pl.BlockSpec((1, d), lambda i, k: (0, 0)),      # ln bias
                pl.BlockSpec((d, tff), lambda i, k: (0, k)),    # W1 slab
                pl.BlockSpec((1, tff), lambda i, k: (0, k)),    # b1 slab
                pl.BlockSpec((tff, d), lambda i, k: (k, 0)),    # W2 slab
                pl.BlockSpec((1, d), lambda i, k: (0, 0)),      # b2
            ],
            out_specs=pl.BlockSpec((tm, d), lambda i, k: (i, 0)),
            scratch_shapes=[pltpu.VMEM((tm, d), w1.dtype),      # normalized rows
                            pltpu.VMEM((tm, d), jnp.float32)],  # accumulator
        ),
        compiler_params=pltpu.CompilerParams(
            dimension_semantics=("parallel", "arbitrary"),
            vmem_limit_bytes=_vmem_limit(tile_bytes, scratch_bytes=scratch_bytes)),
        cost_estimate=cost,
    )(x2d, alpha, beta, w1, b1, w2, b2)


# ----------------------------------------------------------------------------
# Kernel E: standalone final Norm (torch unbiased std)
# ----------------------------------------------------------------------------
def _norm_kernel(x_ref, a_ref, b_ref, o_ref, *, eps, n_feat):
    x = x_ref[...].astype(jnp.float32)
    mean = jnp.mean(x, axis=-1, keepdims=True)
    diff = x - mean
    var = jnp.sum(diff * diff, axis=-1, keepdims=True) / (n_feat - 1)
    inv = pl.reciprocal(jnp.sqrt(var) + eps, approx=False)
    o_ref[...] = (a_ref[...] * diff * inv + b_ref[...]).astype(o_ref.dtype)


def layer_norm_pallas(x2d, alpha, bias, *, tm, eps=1e-6):
    m, d = x2d.shape
    tile_bytes = 2 * tm * d * x2d.dtype.itemsize + 2 * d * 4
    return pl.pallas_call(
        functools.partial(_norm_kernel, eps=eps, n_feat=d),
        out_shape=jax.ShapeDtypeStruct((m, d), x2d.dtype),
        grid_spec=pltpu.PrefetchScalarGridSpec(
            num_scalar_prefetch=0,
            grid=(m // tm,),
            in_specs=[
                pl.BlockSpec((tm, d), lambda i: (i, 0)),
                pl.BlockSpec((1, d), lambda i: (0, 0)),
                pl.BlockSpec((1, d), lambda i: (0, 0)),
            ],
            out_specs=pl.BlockSpec((tm, d), lambda i: (i, 0)),
        ),
        compiler_params=pltpu.CompilerParams(
            dimension_semantics=("parallel",),
            vmem_limit_bytes=_vmem_limit(tile_bytes)),
    )(x2d, alpha, bias)


# ----------------------------------------------------------------------------
# Module forward (use_pallas=False is the plain-JAX reference path with the
# exact same mixed-precision cast points)
# ----------------------------------------------------------------------------
def _norm_ref(x2d, alpha, bias, eps=1e-6):
    d = x2d.shape[-1]
    mean = jnp.mean(x2d, axis=-1, keepdims=True)
    diff = x2d - mean
    var = jnp.sum(diff * diff, axis=-1, keepdims=True) / (d - 1)
    return alpha * diff / (jnp.sqrt(var) + eps) + bias


def _encoder_layer(x2d, mask_b1s, p, *, bsz, s, heads, compute_dtype,
                   use_pallas, tm):
    m, d = x2d.shape
    dk = d // heads

    # ---- fused LN1 + QKV projection ----
    if use_pallas:
        qkv = ln_qkv_pallas(x2d, p["ln1_a"], p["ln1_b"], p["w_qkv"], p["b_qkv"],
                            out_dtype=compute_dtype, tm=tm)
    else:
        x2 = _norm_ref(x2d, p["ln1_a"], p["ln1_b"])
        qkv = (jnp.dot(x2.astype(compute_dtype), p["w_qkv"],
                       preferred_element_type=jnp.float32)
               + p["b_qkv"]).astype(compute_dtype)

    qkv = qkv.reshape(bsz, s, 3, heads, dk)
    q = jnp.transpose(qkv[:, :, 0], (0, 2, 1, 3))       # (B, H, S, dk)
    k = jnp.transpose(qkv[:, :, 1], (0, 2, 1, 3))
    v = jnp.transpose(qkv[:, :, 2], (0, 2, 1, 3))

    # ---- attention core ----
    if use_pallas:
        ctx = attention_pallas(q, k, v, mask_b1s, d_k=dk, out_dtype=compute_dtype)
    else:
        scale = 1.0 / math.sqrt(dk)
        sc = jnp.einsum("bhqd,bhkd->bhqk", q, k,
                        preferred_element_type=jnp.float32) * scale
        sc = jnp.where(mask_b1s[:, :, None, :] == 0.0, 1e-9, sc)
        pr = jax.nn.softmax(sc, axis=-1)
        o = jnp.einsum("bhqk,bhkd->bhqd", pr.astype(compute_dtype), v,
                       preferred_element_type=jnp.float32)
        ctx = jnp.transpose(o, (0, 2, 1, 3)).reshape(bsz, s, d).astype(compute_dtype)
    ctx2d = ctx.reshape(m, d)

    # ---- fused output projection + residual ----
    if use_pallas:
        x2d = outproj_residual_pallas(ctx2d, p["wo"], p["bo"], x2d, tm=tm)
    else:
        x2d = x2d + (jnp.dot(ctx2d, p["wo"],
                             preferred_element_type=jnp.float32) + p["bo"])

    # ---- fused LN2 + FeedForward + residual ----
    if use_pallas:
        x2d = ln_ffn_residual_pallas(x2d, p["ln2_a"], p["ln2_b"],
                                     p["w1"], p["b1"], p["w2"], p["b2"], tm=tm)
    else:
        x2 = _norm_ref(x2d, p["ln2_a"], p["ln2_b"])
        h = jnp.dot(x2.astype(compute_dtype), p["w1"],
                    preferred_element_type=jnp.float32) + p["b1"]
        h = jnp.maximum(h, 0.0)
        y = jnp.dot(h.astype(compute_dtype), p["w2"],
                    preferred_element_type=jnp.float32) + p["b2"]
        x2d = x2d + y
    return x2d


def _positional_encoding(seq_len, d_model):
    pos = jnp.arange(seq_len, dtype=jnp.float32)[:, None]
    i = jnp.arange(0, d_model, 2, dtype=jnp.float32)[None, :]
    even = jnp.sin(pos / 10000.0 ** (2.0 * i / d_model))
    odd = jnp.cos(pos / 10000.0 ** (2.0 * (i + 1.0) / d_model))
    return jnp.stack([even, odd], axis=-1).reshape(seq_len, d_model)


def _prep_mask(mask, bsz, s):
    # TODO(synk): only key-padding masks ((B,1,1,S)/(B,S), same per head & q row)
    # are supported; a full (B,1,S,S) mask would need (S,S) blocks in the kernel.
    if mask is None:
        return jnp.ones((bsz, 1, s), jnp.float32)
    m = jnp.asarray(mask, jnp.float32).reshape(mask.shape[0], 1, s)
    return jnp.broadcast_to(m, (bsz, 1, s))


def encoder_forward(src, mask, params, *, heads,
                    compute_dtype=jnp.bfloat16, use_pallas=True):
    emb_tbl = params["embed"]
    d_model = emb_tbl.shape[1]
    # TODO(synk): embedding gather + PE table stay in plain JAX (XLA gather).
    x = jnp.take(emb_tbl, src, axis=0)                    # (B, S, D) f32
    bsz, s, _ = x.shape
    x = x * math.sqrt(d_model) + _positional_encoding(s, d_model)[None]
    mask_b1s = _prep_mask(mask, bsz, s)

    m = bsz * s
    tm = _pick_tile(m, _default_row_tile())               # chosen once, no padding
    x2d = x.reshape(m, d_model)
    for p in params["layers"]:
        x2d = _encoder_layer(x2d, mask_b1s, p, bsz=bsz, s=s, heads=heads,
                             compute_dtype=compute_dtype,
                             use_pallas=use_pallas, tm=tm)
    if use_pallas:
        out2d = layer_norm_pallas(x2d, params["lnf_a"], params["lnf_b"], tm=tm)
    else:
        out2d = _norm_ref(x2d, params["lnf_a"], params["lnf_b"])
    return out2d.reshape(bsz, s, d_model)


# ----------------------------------------------------------------------------
# parameter init (torch-style uniform +/- 1/sqrt(fan_in); weights stored bf16,
# q/k/v weights pre-concatenated for the fused QKV kernel)
# ----------------------------------------------------------------------------
def init_encoder_params(key, vocab_size, d_model, d_ff, n_layers,
                        compute_dtype=jnp.bfloat16):
    def linear_init(k, fan_in, fan_out):
        kw, kb = jax.random.split(k)
        bound = 1.0 / math.sqrt(fan_in)
        w = jax.random.uniform(kw, (fan_in, fan_out), jnp.float32, -bound, bound)
        b = jax.random.uniform(kb, (1, fan_out), jnp.float32, -bound, bound)
        return w.astype(compute_dtype), b   # weights bf16 for MXU, biases f32

    keys = jax.random.split(key, n_layers + 1)
    params = {
        "embed": jax.random.normal(keys[0], (vocab_size, d_model), jnp.float32),
        "lnf_a": jnp.ones((1, d_model), jnp.float32),
        "lnf_b": jnp.zeros((1, d_model), jnp.float32),
        "layers": [],
    }
    for li in range(n_layers):
        ks = jax.random.split(keys[1 + li], 6)
        wq, bq = linear_init(ks[0], d_model, d_model)
        wk, bk = linear_init(ks[1], d_model, d_model)
        wv, bv = linear_init(ks[2], d_model, d_model)
        wo, bo = linear_init(ks[3], d_model, d_model)
        w1, b1 = linear_init(ks[4], d_model, d_ff)
        w2, b2 = linear_init(ks[5], d_ff, d_model)
        params["layers"].append(dict(
            ln1_a=jnp.ones((1, d_model), jnp.float32),
            ln1_b=jnp.zeros((1, d_model), jnp.float32),
            ln2_a=jnp.ones((1, d_model), jnp.float32),
            ln2_b=jnp.zeros((1, d_model), jnp.float32),
            w_qkv=jnp.concatenate([wq, wk, wv], axis=1),   # (d, 3d)
            b_qkv=jnp.concatenate([bq, bk, bv], axis=1),   # (1, 3d)
            wo=wo, bo=bo, w1=w1, b1=b1, w2=w2, b2=b2))
    return params


if __name__ == "__main__":
    key = jax.random.PRNGKey(0)
    vocab, d_model, d_ff, n_layers, heads = 1000, 128, 2048, 2, 4  # d_ff = module default
    batch, seq = 2, 16

    kp, ks = jax.random.split(key)
    params = init_encoder_params(kp, vocab, d_model, d_ff, n_layers)
    src = jax.random.randint(ks, (batch, seq), 0, vocab, dtype=jnp.int32)

    # src padding mask, shape (B, 1, 1, S): batch 1 has its last 4 tokens padded
    valid = jnp.concatenate(
        [jnp.ones((1, seq), jnp.float32),
         jnp.concatenate([jnp.ones((1, seq - 4), jnp.float32),
                          jnp.zeros((1, 4), jnp.float32)], axis=1)],
        axis=0)
    mask = valid[:, None, None, :]

    out = encoder_forward(src, mask, params, heads=heads, use_pallas=True)
    out = jax.block_until_ready(out)

    ref = encoder_forward(src, mask, params, heads=heads, use_pallas=False)
    ref = jax.block_until_ready(ref)

    assert out.shape == (batch, seq, d_model)
    max_err = float(jnp.max(jnp.abs(out - ref)))
    assert jnp.allclose(out, ref, atol=1e-2, rtol=1e-2), f"max_err={max_err}"
    print("KERNEL_OK")
</pallas_src>

<mosaic_0001>
module attributes {stable_mosaic.version = 11 : i64} {
  func.func @_ln_matmul_kernel(%arg0: i32, %arg1: memref<32x128xf32, #tpu.memory_space<vmem>>, %arg2: memref<1x128xf32, #tpu.memory_space<vmem>>, %arg3: memref<1x128xf32, #tpu.memory_space<vmem>>, %arg4: memref<128x384xbf16, #tpu.memory_space<vmem>>, %arg5: memref<1x384xf32, #tpu.memory_space<vmem>>, %arg6: memref<32x384xbf16, #tpu.memory_space<vmem>>) attributes {dimension_semantics = [#tpu.dimension_semantics<parallel>], iteration_bounds = array<i64: 1>, scalar_prefetch = 0 : i64, scratch_operands = 0 : i64, tpu.core_type = #tpu.core_type<tc>, window_params = [{transform_indices = @transform_0, window_bounds = array<i64: 32, 128>}, {pipeline_mode = #tpu.pipeline_mode<synchronous>, transform_indices = @transform_1, window_bounds = array<i64: 1, 128>}, {pipeline_mode = #tpu.pipeline_mode<synchronous>, transform_indices = @transform_2, window_bounds = array<i64: 1, 128>}, {pipeline_mode = #tpu.pipeline_mode<synchronous>, transform_indices = @transform_3, window_bounds = array<i64: 128, 384>}, {pipeline_mode = #tpu.pipeline_mode<synchronous>, transform_indices = @transform_4, window_bounds = array<i64: 1, 384>}, {transform_indices = @transform_5, window_bounds = array<i64: 32, 384>}]} {
    %c0 = arith.constant 0 : index
    %c0_0 = arith.constant 0 : index
    %0 = vector.load %arg1[%c0, %c0_0] : memref<32x128xf32, #tpu.memory_space<vmem>>, vector<32x128xf32>
    %cst = arith.constant dense<0.000000e+00> : vector<32xf32>
    %1 = vector.multi_reduction <add>, %0, %cst [1] : vector<32x128xf32> to vector<32xf32>
    %2 = vector.shape_cast %1 : vector<32xf32> to vector<32x1xf32>
    %cst_1 = arith.constant 1.280000e+02 : f32
    %3 = vector.broadcast %cst_1 : f32 to vector<32x1xf32>
    %4 = arith.divf %2, %3 : vector<32x1xf32>
    %5 = vector.broadcast %4 : vector<32x1xf32> to vector<32x128xf32>
    %6 = arith.subf %0, %5 : vector<32x128xf32>
    %7 = arith.mulf %6, %6 : vector<32x128xf32>
    %cst_2 = arith.constant dense<0.000000e+00> : vector<32xf32>
    %8 = vector.multi_reduction <add>, %7, %cst_2 [1] : vector<32x128xf32> to vector<32xf32>
    %9 = vector.shape_cast %8 : vector<32xf32> to vector<32x1xf32>
    %cst_3 = arith.constant 1.270000e+02 : f32
    %10 = vector.broadcast %cst_3 : f32 to vector<32x1xf32>
    %11 = arith.divf %9, %10 : vector<32x1xf32>
    %12 = math.sqrt %11 : vector<32x1xf32>
    %cst_4 = arith.constant 9.99999997E-7 : f32
    %13 = vector.broadcast %cst_4 : f32 to vector<32x1xf32>
    %14 = arith.addf %12, %13 : vector<32x1xf32>
    %15 = tpu.reciprocal %14 : vector<32x1xf32> -> vector<32x1xf32>
    %c0_5 = arith.constant 0 : index
    %c0_6 = arith.constant 0 : index
    %16 = vector.load %arg2[%c0_5, %c0_6] : memref<1x128xf32, #tpu.memory_space<vmem>>, vector<1x128xf32>
    %17 = vector.broadcast %16 : vector<1x128xf32> to vector<32x128xf32>
    %18 = arith.mulf %17, %6 : vector<32x128xf32>
    %19 = vector.broadcast %15 : vector<32x1xf32> to vector<32x128xf32>
    %20 = arith.mulf %18, %19 : vector<32x128xf32>
    %c0_7 = arith.constant 0 : index
    %c0_8 = arith.constant 0 : index
    %21 = vector.load %arg3[%c0_7, %c0_8] : memref<1x128xf32, #tpu.memory_space<vmem>>, vector<1x128xf32>
    %22 = vector.broadcast %21 : vector<1x128xf32> to vector<32x128xf32>
    %23 = arith.addf %20, %22 : vector<32x128xf32>
    %24 = arith.truncf %23 : vector<32x128xf32> to vector<32x128xbf16>
    %c0_9 = arith.constant 0 : index
    %c0_10 = arith.constant 0 : index
    %25 = vector.load %arg4[%c0_9, %c0_10] : memref<128x384xbf16, #tpu.memory_space<vmem>>, vector<128x384xbf16>
    %cst_11 = arith.constant dense<0.000000e+00> : vector<32x384xf32>
    %26 = tpu.matmul %24, %25, %cst_11 {dimension_numbers = #tpu.dot_dimension_numbers<[1], [0], [0], [1], [0, 0, 1, 1], [], []>} : vector<32x128xbf16>, vector<128x384xbf16>, vector<32x384xf32> -> vector<32x384xf32>
    %c0_12 = arith.constant 0 : index
    %c0_13 = arith.constant 0 : index
    %27 = vector.load %arg5[%c0_12, %c0_13] : memref<1x384xf32, #tpu.memory_space<vmem>>, vector<1x384xf32>
    %28 = vector.broadcast %27 : vector<1x384xf32> to vector<32x384xf32>
    %29 = arith.addf %26, %28 : vector<32x384xf32>
    %30 = arith.truncf %29 : vector<32x384xf32> to vector<32x384xbf16>
    %c0_14 = arith.constant 0 : index
    %c0_15 = arith.constant 0 : index
    %31 = vector.load %arg6[%c0_14, %c0_15] : memref<32x384xbf16, #tpu.memory_space<vmem>>, vector<32x384xbf16>
    tpu.vector_store %arg6[%c0_14, %c0_15], %30 {strides = array<i32>} : memref<32x384xbf16, #tpu.memory_space<vmem>>, vector<32x384xbf16>,
    return
  }
  func.func @transform_0(%arg0: i32) -> (i32, i32) {
    %c0_i32 = arith.constant 0 : i32
    %c0_i32_0 = arith.constant 0 : i32
    return %arg0, %c0_i32 : i32, i32
  }
  func.func @transform_1(%arg0: i32) -> (i32, i32) {
    %c0_i32 = arith.constant 0 : i32
    %c0_i32_0 = arith.constant 0 : i32
    %c0_i32_1 = arith.constant 0 : i32
    return %c0_i32, %c0_i32_0 : i32, i32
  }
  func.func @transform_2(%arg0: i32) -> (i32, i32) {
    %c0_i32 = arith.constant 0 : i32
    %c0_i32_0 = arith.constant 0 : i32
    %c0_i32_1 = arith.constant 0 : i32
    return %c0_i32, %c0_i32_0 : i32, i32
  }
  func.func @transform_3(%arg0: i32) -> (i32, i32) {
    %c0_i32 = arith.constant 0 : i32
    %c0_i32_0 = arith.constant 0 : i32
    %c0_i32_1 = arith.constant 0 : i32
    return %c0_i32, %c0_i32_0 : i32, i32
  }
  func.func @transform_4(%arg0: i32) -> (i32, i32) {
    %c0_i32 = arith.constant 0 : i32
    %c0_i32_0 = arith.constant 0 : i32
    %c0_i32_1 = arith.constant 0 : i32
    return %c0_i32, %c0_i32_0 : i32, i32
  }
  func.func @transform_5(%arg0: i32) -> (i32, i32) {
    %c0_i32 = arith.constant 0 : i32
    %c0_i32_0 = arith.constant 0 : i32
    return %arg0, %c0_i32 : i32, i32
  }
}

</mosaic_0001>

<llo_original>
// kernel: tpu_custom_call.1
$region0: #{tpu_custom_call.1}
  #allocation0 [shape = 'u32[]', space=smem, size = 0x4, offset = 0x4, fixed_abs, tag = 'smem constant byte address 0x4 - core index']
  #allocation1 [shape = 'u32[144,128]{1,0:T(1,128)}', space=vmem, size = 0x12000, scoped, tag = 'internal scratch']
  %s0 = inlined_call_operand.hbm [shape: f32[32,128], index: 0, kind: input, shape index: {}]
  %s1 = inlined_call_operand.vmem [shape: f32[1,128], index: 1, kind: input, shape index: {}]
  %s2 = inlined_call_operand.vmem [shape: f32[1,128], index: 2, kind: input, shape index: {}]
  %s3 = inlined_call_operand.hbm [shape: bf16[128,384], index: 3, kind: input, shape index: {}]
  %s4 = inlined_call_operand.vmem [shape: f32[1,384], index: 4, kind: input, shape index: {}]
  %s5 = inlined_call_operand.hbm [shape: bf16[32,384], index: 5, kind: output, shape index: {}]
  %s6 = sld [smem:[#allocation0]]
  $region38: #{tpu_custom_call.1} parent=0
    _
  %s8 = ssub.s32 1, %s6
  %s9 = scalar_select 0, %s8, %s6
  $region1: #{tpu_custom_call.1} parent=0
    #allocation2 [shape = 'u8[16384]{0}', space=vmem, size = 0x4000, scoped, tag = 'input window, operand 0, single buffered']
    #allocation3 [shape = 's32[1]{0}', space=sflag, size = 0x4, scoped, tag = 'scoped memory for tpu_custom_call.1']
    #allocation4 [shape = 's32[1]{0}', space=sflag, size = 0x4, scoped, tag = 'scoped memory for tpu_custom_call.1']
    #allocation5 [shape = 'u8[98304]{0}', space=vmem, size = 0x18000, scoped, tag = 'input window, operand 3, single buffered']
    #allocation6 [shape = 's32[1]{0}', space=sflag, size = 0x4, scoped, tag = 'scoped memory for tpu_custom_call.1']
    #allocation7 [shape = 'u8[24576]{0}', space=vmem, size = 0x6000, scoped, tag = 'output window, operand 0, single buffered']
    %10 = vsyncpa [#allocation3], 0
    %11 = vsyncpa [#allocation6], 0
    %12 = vsyncpa [#allocation4], 0
    // Predicated region
    $region2: #{tpu_custom_call.1} parent=1 // pred_check
      _
    $region3: #{tpu_custom_call.1} parent=1 // pred_check_branch
      %14 = sbr.rel (0) target = $region5
    $region4: #{tpu_custom_call.1} parent=1 // pred_region
      %s16 = ssub.s32 512, 512
      %17 = vsyncadd [#allocation3], %s16
      %s18 = sshll.u32 [#allocation2], 4
      %s19 = int_to_ptr.vmem [resolvable:$true] %s18
      %24 = dma.hbm_to_vmem [thread:$0]  %s0, 512, %s19, [#allocation3], 128, 128, 8
    $region5: #{tpu_custom_call.1} parent=1 // pred_fallthru
      _
    // Predicated region
    $region6: #{tpu_custom_call.1} parent=1 // pred_check
      _
    $region7: #{tpu_custom_call.1} parent=1 // pred_check_branch
      %26 = sbr.rel (0) target = $region9
    $region8: #{tpu_custom_call.1} parent=1 // pred_region
      _
    $region9: #{tpu_custom_call.1} parent=1 // pred_fallthru
      _
    // Predicated region
    $region10: #{tpu_custom_call.1} parent=1 // pred_check
      _
    $region11: #{tpu_custom_call.1} parent=1 // pred_check_branch
      %28 = sbr.rel (0) target = $region13
    $region12: #{tpu_custom_call.1} parent=1 // pred_region
      _
    $region13: #{tpu_custom_call.1} parent=1 // pred_fallthru
      _
    // Predicated region
    $region14: #{tpu_custom_call.1} parent=1 // pred_check
      _
    $region15: #{tpu_custom_call.1} parent=1 // pred_check_branch
      %30 = sbr.rel (0) target = $region17
    $region16: #{tpu_custom_call.1} parent=1 // pred_region
      %s32 = ssub.s32 3072, 3072
      %33 = vsyncadd [#allocation6], %s32
      %s34 = sshll.u32 [#allocation5], 4
      %s35 = int_to_ptr.vmem [resolvable:$true] %s34
      %40 = dma.hbm_to_vmem [thread:$0]  %s3, 3072, %s35, [#allocation6], 192, 192, 12
    $region17: #{tpu_custom_call.1} parent=1 // pred_fallthru
      _
    // Predicated region
    $region18: #{tpu_custom_call.1} parent=1 // pred_check
      _
    $region19: #{tpu_custom_call.1} parent=1 // pred_check_branch
      %42 = sbr.rel (0) target = $region21
    $region20: #{tpu_custom_call.1} parent=1 // pred_region
      _
    $region21: #{tpu_custom_call.1} parent=1 // pred_fallthru
      _
    // Predicated region
    $region22: #{tpu_custom_call.1} parent=1 // pred_check
      _
    $region23: #{tpu_custom_call.1} parent=1 // pred_check_branch
      %44 = sbr.rel (0) target = $region25
    $region24: #{tpu_custom_call.1} parent=1 // pred_region
      %45 = dma.done [#allocation3], 512
    $region25: #{tpu_custom_call.1} parent=1 // pred_fallthru
      _
    // Predicated region
    $region26: #{tpu_custom_call.1} parent=1 // pred_check
      _
    $region27: #{tpu_custom_call.1} parent=1 // pred_check_branch
      %47 = sbr.rel (0) target = $region29
    $region28: #{tpu_custom_call.1} parent=1 // pred_region
      %48 = dma.done [#allocation6], 3072
    $region29: #{tpu_custom_call.1} parent=1 // pred_fallthru
      _
    %v50 = vld [vmem:[#allocation2] sm:$0xff]
    %v51 = vld [vmem:[#allocation2 + $0x8] sm:$0xff]
    %v52 = vld [vmem:[#allocation2 + $0x10] sm:$0xff]
    %v53 = vld [vmem:[#allocation2 + $0x18] sm:$0xff]
    %54 = vadd.xlane.f32.xlu0 %v50
    %v55 = vpop.xlane.xlu0 %54
    %56 = vadd.xlane.f32.xlu0 %v51
    %v57 = vpop.xlane.xlu0 %56
    %58 = vadd.xlane.f32.xlu0 %v52
    %v59 = vpop.xlane.xlu0 %58
    %60 = vadd.xlane.f32.xlu0 %v53
    %v61 = vpop.xlane.xlu0 %60
    %v62 = vrcp.pop 128.0
    %v63 = vmul.f32 %v55, %v62
    %v64 = vmul.f32 %v57, %v62
    %v65 = vmul.f32 %v59, %v62
    %v66 = vmul.f32 %v61, %v62
    %v67 = vsub.f32 %v50, %v63
    %v68 = vsub.f32 %v51, %v64
    %v69 = vsub.f32 %v52, %v65
    %v70 = vsub.f32 %v53, %v66
    %v71 = vmul.f32 %v67, %v67
    %v72 = vmul.f32 %v68, %v68
    %v73 = vmul.f32 %v69, %v69
    %v74 = vmul.f32 %v70, %v70
    %75 = vadd.xlane.f32.xlu0 %v71
    %v76 = vpop.xlane.xlu0 %75
    %77 = vadd.xlane.f32.xlu0 %v72
    %v78 = vpop.xlane.xlu0 %77
    %79 = vadd.xlane.f32.xlu0 %v73
    %v80 = vpop.xlane.xlu0 %79
    %81 = vadd.xlane.f32.xlu0 %v74
    %v82 = vpop.xlane.xlu0 %81
    %v83 = vrcp.pop 127.0
    %v84 = vmul.f32 %v76, %v83
    %v85 = vmul.f32 %v78, %v83
    %v86 = vmul.f32 %v80, %v83
    %v87 = vmul.f32 %v82, %v83
    %v88 = vrsqrt.pop %v84
    %v89 = vmul.f32 %v84, %v88
    %vm90 = vcmp.eq.f32.partialorder %v84, inf
    %v91 = vsel %vm90, %v84, %v89
    %vm92 = vcmp.eq.f32.partialorder %v84, 0.0
    %v93 = vand.u32 %v84, 2147483648
    %v94 = vsel %vm92, %v93, %v91
    %v95 = vrsqrt.pop %v85
    %v96 = vmul.f32 %v85, %v95
    %vm97 = vcmp.eq.f32.partialorder %v85, inf
    %v98 = vsel %vm97, %v85, %v96
    %vm99 = vcmp.eq.f32.partialorder %v85, 0.0
    %v100 = vand.u32 %v85, 2147483648
    %v101 = vsel %vm99, %v100, %v98
    %v102 = vrsqrt.pop %v86
    %v103 = vmul.f32 %v86, %v102
    %vm104 = vcmp.eq.f32.partialorder %v86, inf
    %v105 = vsel %vm104, %v86, %v103
    %vm106 = vcmp.eq.f32.partialorder %v86, 0.0
    %v107 = vand.u32 %v86, 2147483648
    %v108 = vsel %vm106, %v107, %v105
    %v109 = vrsqrt.pop %v87
    %v110 = vmul.f32 %v87, %v109
    %vm111 = vcmp.eq.f32.partialorder %v87, inf
    %v112 = vsel %vm111, %v87, %v110
    %vm113 = vcmp.eq.f32.partialorder %v87, 0.0
    %v114 = vand.u32 %v87, 2147483648
    %v115 = vsel %vm113, %v114, %v112
    %v116 = vadd.f32 %v94, 1e-06
    %v117 = vadd.f32 %v101, 1e-06
    %v118 = vadd.f32 %v108, 1e-06
    %v119 = vadd.f32 %v115, 1e-06
    %v120 = vrcp.pop %v116
    %v121 = vrcp.pop %v117
    %v122 = vrcp.pop %v118
    %v123 = vrcp.pop %v119
    %v124 = vld [vmem:[%s1] sm:$0x1]
    %v126 = vlaneseq
    %v127 = vshrl.u32 %v126, 7
    %v128 = vsub.s32 0, %v127
    %v129 = vrot.slane %v124, %v128
    %v131 = vmul.f32 %v129, %v67
    %v132 = vmul.f32 %v129, %v68
    %v133 = vmul.f32 %v129, %v69
    %v134 = vmul.f32 %v129, %v70
    %v135 = vmul.f32 %v131, %v120
    %v136 = vmul.f32 %v132, %v121
    %v137 = vmul.f32 %v133, %v122
    %v138 = vmul.f32 %v134, %v123
    %v139 = vld [vmem:[%s2] sm:$0x1]
    %v141 = vlaneseq
    %v142 = vshrl.u32 %v141, 7
    %v143 = vsub.s32 0, %v142
    %v144 = vrot.slane %v139, %v143
    %v146 = vadd.f32 %v135, %v144
    %v147 = vadd.f32 %v136, %v144
    %v148 = vadd.f32 %v137, %v144
    %v149 = vadd.f32 %v138, %v144
    %v150 = vpack.c.bf16 %v147, %v146
    %v151 = vpack.c.bf16 %v149, %v148
    %v152 = vld [vmem:[#allocation5] sm:$0xff]
    %v153 = vld [vmem:[#allocation5 + $0x8] sm:$0xf]
    %v154 = vld [vmem:[#allocation5 + $0xc] sm:$0xff]
    %v155 = vld [vmem:[#allocation5 + $0x14] sm:$0xf]
    %v156 = vld [vmem:[#allocation5 + $0x18] sm:$0xff]
    %v157 = vld [vmem:[#allocation5 + $0x20] sm:$0xf]
    %v158 = vld [vmem:[#allocation5 + $0x24] sm:$0xff]
    %v159 = vld [vmem:[#allocation5 + $0x2c] sm:$0xf]
    %v160 = vld [vmem:[#allocation5 + $0x30] sm:$0xff]
    %v161 = vld [vmem:[#allocation5 + $0x38] sm:$0xf]
    %v162 = vld [vmem:[#allocation5 + $0x3c] sm:$0xff]
    %v163 = vld [vmem:[#allocation5 + $0x44] sm:$0xf]
    %v164 = vld [vmem:[#allocation5 + $0x48] sm:$0xff]
    %v165 = vld [vmem:[#allocation5 + $0x50] sm:$0xf]
    %v166 = vld [vmem:[#allocation5 + $0x54] sm:$0xff]
    %v167 = vld [vmem:[#allocation5 + $0x5c] sm:$0xf]
    %v168 = vld [vmem:[#allocation5 + $0x60] sm:$0xff]
    %v169 = vld [vmem:[#allocation5 + $0x68] sm:$0xf]
    %v170 = vld [vmem:[#allocation5 + $0x6c] sm:$0xff]
    %v171 = vld [vmem:[#allocation5 + $0x74] sm:$0xf]
    %v172 = vld [vmem:[#allocation5 + $0x78] sm:$0xff]
    %v173 = vld [vmem:[#allocation5 + $0x80] sm:$0xf]
    %v174 = vld [vmem:[#allocation5 + $0x84] sm:$0xff]
    %v175 = vld [vmem:[#allocation5 + $0x8c] sm:$0xf]
    %v176 = vld [vmem:[#allocation5 + $0x90] sm:$0xff]
    %v177 = vld [vmem:[#allocation5 + $0x98] sm:$0xf]
    %v178 = vld [vmem:[#allocation5 + $0x9c] sm:$0xff]
    %v179 = vld [vmem:[#allocation5 + $0xa4] sm:$0xf]
    %v180 = vld [vmem:[#allocation5 + $0xa8] sm:$0xff]
    %v181 = vld [vmem:[#allocation5 + $0xb0] sm:$0xf]
    %v182 = vld [vmem:[#allocation5 + $0xb4] sm:$0xff]
    %v183 = vld [vmem:[#allocation5 + $0xbc] sm:$0xf]
    %v184 = vld [vmem:[%s4] sm:$0x7]
    %v186 = vlaneseq
    %v187 = vshrl.u32 %v186, 7
    %v188 = vsub.s32 0, %v187
    %v189 = vrot.slane %v184, %v188
    %v190 = vlaneseq
    %v191 = vshrl.u32 %v190, 7
    %v192 = vsub.s32 1, %v191
    %v193 = vrot.slane %v184, %v192
    %v194 = vlaneseq
    %v195 = vshrl.u32 %v194, 7
    %v196 = vsub.s32 2, %v195
    %v197 = vrot.slane %v184, %v196
    %v233 = vunpack.c.l.b16 %v152
    %v234 = vunpack.c.h.b16 %v152
    %v235 = vunpack.c.l.b16 %v153
    %v236 = vunpack.c.l.b16 %v154
    %v237 = vunpack.c.h.b16 %v154
    %v238 = vunpack.c.l.b16 %v155
    %v239 = vunpack.c.l.b16 %v156
    %v240 = vunpack.c.h.b16 %v156
    %v241 = vunpack.c.l.b16 %v157
    %v242 = vunpack.c.l.b16 %v158
    %v243 = vunpack.c.h.b16 %v158
    %v244 = vunpack.c.l.b16 %v159
    %v245 = vunpack.c.l.b16 %v160
    %v246 = vunpack.c.h.b16 %v160
    %v247 = vunpack.c.l.b16 %v161
    %v248 = vunpack.c.l.b16 %v162
    %v249 = vunpack.c.h.b16 %v162
    %v250 = vunpack.c.l.b16 %v163
    %v251 = vunpack.c.l.b16 %v164
    %v252 = vunpack.c.h.b16 %v164
    %v253 = vunpack.c.l.b16 %v165
    %v254 = vunpack.c.l.b16 %v166
    %v255 = vunpack.c.h.b16 %v166
    %v256 = vunpack.c.l.b16 %v167
    %v257 = vunpack.c.l.b16 %v168
    %v258 = vunpack.c.h.b16 %v168
    %v259 = vunpack.c.l.b16 %v169
    %v260 = vunpack.c.l.b16 %v170
    %v261 = vunpack.c.h.b16 %v170
    %v262 = vunpack.c.l.b16 %v171
    %v263 = vunpack.c.l.b16 %v172
    %v264 = vunpack.c.h.b16 %v172
    %v265 = vunpack.c.l.b16 %v173
    %v266 = vunpack.c.l.b16 %v174
    %v267 = vunpack.c.h.b16 %v174
    %v268 = vunpack.c.l.b16 %v175
    %v269 = vunpack.c.l.b16 %v176
    %v270 = vunpack.c.h.b16 %v176
    %v271 = vunpack.c.l.b16 %v177
    %v272 = vunpack.c.l.b16 %v178
    %v273 = vunpack.c.h.b16 %v178
    %v274 = vunpack.c.l.b16 %v179
    %v275 = vunpack.c.l.b16 %v180
    %v276 = vunpack.c.h.b16 %v180
    %v277 = vunpack.c.l.b16 %v181
    %v278 = vunpack.c.l.b16 %v182
    %v279 = vunpack.c.h.b16 %v182
    %v280 = vunpack.c.l.b16 %v183
    %v281 = vpack.c.b16 %v236, %v233
    %v282 = vpack.c.b16 %v237, %v234
    %v283 = vpack.c.b16 %v238, %v235
    %v284 = vpack.c.b16 %v242, %v239
    %v285 = vpack.c.b16 %v243, %v240
    %v286 = vpack.c.b16 %v244, %v241
    %v287 = vpack.c.b16 %v248, %v245
    %v288 = vpack.c.b16 %v249, %v246
    %v289 = vpack.c.b16 %v250, %v247
    %v290 = vpack.c.b16 %v254, %v251
    %v291 = vpack.c.b16 %v255, %v252
    %v292 = vpack.c.b16 %v256, %v253
    %v293 = vpack.c.b16 %v260, %v257
    %v294 = vpack.c.b16 %v261, %v258
    %v295 = vpack.c.b16 %v262, %v259
    %v296 = vpack.c.b16 %v266, %v263
    %v297 = vpack.c.b16 %v267, %v264
    %v298 = vpack.c.b16 %v268, %v265
    %v299 = vpack.c.b16 %v272, %v269
    %v300 = vpack.c.b16 %v273, %v270
    %v301 = vpack.c.b16 %v274, %v271
    %v302 = vpack.c.b16 %v278, %v275
    %v303 = vpack.c.b16 %v279, %v276
    %v304 = vpack.c.b16 %v280, %v277
    %329 = vmatprep.subr.bf16.mxu0 %v282
    %330 = vmatpush1.bf16.msra.mxu0 %v281
    %331 = vmatprep.subr.bf16.mxu0 %v285
    %332 = vmatpush1.bf16.msra.mxu0 %v284
    %333 = vmatprep.subr.bf16.mxu0 %v288
    %334 = vmatpush1.bf16.msra.mxu0 %v287
    %335 = vmatprep.subr.bf16.mxu0 %v291
    %336 = vmatpush1.bf16.msra.mxu0 %v290
    %337 = vmatprep.subr.bf16.mxu0 %v294
    %338 = vmatpush1.bf16.msra.mxu0 %v293
    %339 = vmatprep.subr.bf16.mxu0 %v297
    %340 = vmatpush1.bf16.msra.mxu0 %v296
    %341 = vmatprep.subr.bf16.mxu0 %v300
    %342 = vmatpush1.bf16.msra.mxu0 %v299
    %343 = vmatprep.subr.bf16.mxu0 %v303
    %344 = vmatpush1.bf16.msra.mxu0 %v302
    %345 = vmatprep.subr.bf16.mxu0 0
    %346 = vmatpush1.bf16.msra.mxu0 0
    %347 = vmatprep.subr.bf16.mxu0 0
    %348 = vmatpush1.bf16.msra.mxu0 0
    %349 = vmatprep.subr.bf16.mxu0 0
    %350 = vmatpush1.bf16.msra.mxu0 0
    %351 = vmatprep.subr.bf16.mxu0 0
    %352 = vmatpush1.bf16.msra.mxu0 0
    %353 = vmatprep.subr.bf16.mxu0 0
    %354 = vmatpush1.bf16.msra.mxu0 0
    %355 = vmatprep.subr.bf16.mxu0 0
    %356 = vmatpush1.bf16.msra.mxu0 0
    %357 = vmatprep.subr.bf16.mxu0 0
    %358 = vmatpush1.bf16.msra.mxu0 0
    %359 = vmatprep.subr.bf16.mxu0 0
    %360 = vmatpush1.bf16.msra.mxu0 0
    %361 = vmatprep.mubr.bf16.mxu0 0
    %362 = vmatmul.mubr.bf16.gmra.mrb[0].mxu0 %v150
    %v363 = vpop.f32.mrb[0].mxu0
    %v364 = vadd.f32 %v189, %v363
    %v365 = vpop.f32.mrb[0].mxu0
    %v366 = vadd.f32 %v193, %v365
    %v367 = vpop.f32.mrb[0].mxu0
    %v368 = vadd.f32 %v189, %v367
    %v369 = vpop.f32.mrb[0].mxu0
    %v370 = vadd.f32 %v193, %v369
    %371 = vmatprep.mubr.bf16.mxu0 0
    %372 = vmatmul.mubr.bf16.gmra.mrb[0].mxu0 %v151
    %v373 = vpop.f32.mrb[0].mxu0
    %v374 = vadd.f32 %v189, %v373
    %v375 = vpop.f32.mrb[0].mxu0
    %v376 = vadd.f32 %v193, %v375
    %v377 = vpop.f32.mrb[0].mxu0
    %v378 = vadd.f32 %v189, %v377
    %v379 = vpop.f32.mrb[0].mxu0
    %v380 = vadd.f32 %v193, %v379
    %381 = vdwg.mxu0
    %382 = vmatprep.subr.bf16.mxu0 0
    %383 = vmatpush1.bf16.msra.mxu0 %v283
    %384 = vmatprep.subr.bf16.mxu0 0
    %385 = vmatpush1.bf16.msra.mxu0 %v286
    %386 = vmatprep.subr.bf16.mxu0 0
    %387 = vmatpush1.bf16.msra.mxu0 %v289
    %388 = vmatprep.subr.bf16.mxu0 0
    %389 = vmatpush1.bf16.msra.mxu0 %v292
    %390 = vmatprep.subr.bf16.mxu0 0
    %391 = vmatpush1.bf16.msra.mxu0 %v295
    %392 = vmatprep.subr.bf16.mxu0 0
    %393 = vmatpush1.bf16.msra.mxu0 %v298
    %394 = vmatprep.subr.bf16.mxu0 0
    %395 = vmatpush1.bf16.msra.mxu0 %v301
    %396 = vmatprep.subr.bf16.mxu0 0
    %397 = vmatpush1.bf16.msra.mxu0 %v304
    %398 = vmatprep.subr.bf16.mxu0 0
    %399 = vmatpush1.bf16.msra.mxu0 0
    %400 = vmatprep.subr.bf16.mxu0 0
    %401 = vmatpush1.bf16.msra.mxu0 0
    %402 = vmatprep.subr.bf16.mxu0 0
    %403 = vmatpush1.bf16.msra.mxu0 0
    %404 = vmatprep.subr.bf16.mxu0 0
    %405 = vmatpush1.bf16.msra.mxu0 0
    %406 = vmatprep.subr.bf16.mxu0 0
    %407 = vmatpush1.bf16.msra.mxu0 0
    %408 = vmatprep.subr.bf16.mxu0 0
    %409 = vmatpush1.bf16.msra.mxu0 0
    %410 = vmatprep.subr.bf16.mxu0 0
    %411 = vmatpush1.bf16.msra.mxu0 0
    %412 = vmatprep.subr.bf16.mxu0 0
    %413 = vmatpush1.bf16.msra.mxu0 0
    %414 = vmatprep.mubr.bf16.mxu0 0
    %415 = vmatmul.mubr.bf16.gmra.mrb[0].mxu0 %v150
    %v416 = vpop.f32.mrb[0].mxu0
    %v417 = vadd.f32 %v197, %v416
    %v418 = vpop.f32.mrb[0].mxu0
    %v419 = vpop.f32.mrb[0].mxu0
    %v420 = vadd.f32 %v197, %v419
    %v421 = vpop.f32.mrb[0].mxu0
    %422 = vmatprep.mubr.bf16.mxu0 0
    %423 = vmatmul.mubr.bf16.gmra.mrb[0].mxu0 %v151
    %v424 = vpop.f32.mrb[0].mxu0
    %v425 = vadd.f32 %v197, %v424
    %v426 = vpop.f32.mrb[0].mxu0
    %v427 = vpop.f32.mrb[0].mxu0
    %v428 = vadd.f32 %v197, %v427
    %v429 = vpop.f32.mrb[0].mxu0
    %430 = vdwg.mxu0
    %v431 = vpack.c.bf16 %v368, %v364
    %v432 = vpack.c.bf16 %v370, %v366
    %v433 = vpack.c.bf16 %v420, %v417
    %v434 = vpack.c.bf16 %v378, %v374
    %v435 = vpack.c.bf16 %v380, %v376
    %v436 = vpack.c.bf16 %v428, %v425
    %v443 = vunpack.c.l.b16 %v431
    %v444 = vunpack.c.l.b16 %v432
    %v445 = vunpack.c.l.b16 %v433
    %v446 = vunpack.c.h.b16 %v431
    %v447 = vunpack.c.h.b16 %v432
    %v448 = vunpack.c.h.b16 %v433
    %v449 = vunpack.c.l.b16 %v434
    %v450 = vunpack.c.l.b16 %v435
    %v451 = vunpack.c.l.b16 %v436
    %v452 = vunpack.c.h.b16 %v434
    %v453 = vunpack.c.h.b16 %v435
    %v454 = vunpack.c.h.b16 %v436
    %v455 = vpack.c.b16 %v444, %v443
    %v456 = vpack.c.b16 %v445, %v445
    %v457 = vpack.c.b16 %v447, %v446
    %v458 = vpack.c.b16 %v448, %v448
    %v459 = vpack.c.b16 %v450, %v449
    %v460 = vpack.c.b16 %v451, %v451
    %v461 = vpack.c.b16 %v453, %v452
    %v462 = vpack.c.b16 %v454, %v454
    %471 = vst [vmem:[#allocation7] sm:$0xff] %v455
    %472 = vst [vmem:[#allocation7 + $0x8] sm:$0xf] %v456
    %473 = vst [vmem:[#allocation7 + $0xc] sm:$0xff] %v457
    %474 = vst [vmem:[#allocation7 + $0x14] sm:$0xf] %v458
    %475 = vst [vmem:[#allocation7 + $0x18] sm:$0xff] %v459
    %476 = vst [vmem:[#allocation7 + $0x20] sm:$0xf] %v460
    %477 = vst [vmem:[#allocation7 + $0x24] sm:$0xff] %v461
    %478 = vst [vmem:[#allocation7 + $0x2c] sm:$0xf] %v462
    // Predicated region
    $region30: #{tpu_custom_call.1} parent=1 // pred_check
      _
    $region31: #{tpu_custom_call.1} parent=1 // pred_check_branch
      %480 = sbr.rel (0) target = $region33
    $region32: #{tpu_custom_call.1} parent=1 // pred_region
      %s482 = ssub.s32 768, 768
      %483 = vsyncadd [#allocation4], %s482
      %s484 = sshll.u32 [#allocation7], 4
      %s485 = int_to_ptr.vmem [resolvable:$true] %s484
      %490 = dma.vmem_to_hbm [thread:$0]  %s485, 768, %s5, [#allocation4], 192, 192, 12
    $region33: #{tpu_custom_call.1} parent=1 // pred_fallthru
      _
    // Predicated region
    $region34: #{tpu_custom_call.1} parent=1 // pred_check
      _
    $region35: #{tpu_custom_call.1} parent=1 // pred_check_branch
      %492 = sbr.rel (0) target = $region37
    $region36: #{tpu_custom_call.1} parent=1 // pred_region
      %493 = dma.done [#allocation4], 768
    $region37: #{tpu_custom_call.1} parent=1 // pred_fallthru
      _
    %494 = vsyncpa [#allocation3], 1
    %495 = vsyncpa [#allocation6], 1
    %496 = vsyncpa [#allocation4], 1

</llo_original>
